<compile_context>
chip_gen: v7x
topology: tpu7x:2x2x1
jax: 0.10.0
libtpu: 0.0.40
codegen_flags: <defaults>
</compile_context>

<pallas_src>
import functools

import jax
import jax.numpy as jnp
import numpy as np
from jax.experimental import pallas as pl
from jax.experimental.pallas import tpu as pltpu

# ----------------------- configuration (small demo sizes) -------------------
D_MODEL = 16            # d_model
NHEAD = 4               # nhead -> head dim 4
KNUM = 8                # number of kNN neighbours (K * C = 128 -> one lane tile)
POS_SIZE = D_MODEL      # pos_size must equal d_model for the residual add
B = 2                   # batch
NS = 512                # points per cloud
TP = 512                # point tile (lane axis); P//TP = 2 keeps both v7x cores busy
TQ_PD = 128             # query-row tile for the pairwise-distance kernel

ATT_EPS = 1e-6          # LinearAttention eps
LN_EPS = 1e-5           # nn.LayerNorm default eps


# ----------------------------- Pallas kernels --------------------------------
def pdist_kernel(xq_ref, xk_ref, knorm_ref, o_ref):
    """Negative squared pairwise distances (the torch knn() formula), computed
    with everything lane-dense in the native [B, C, N] layout.

    xq_ref    [1, C, TQ]  query points (channels on sublanes, points on lanes)
    xk_ref    [1, C, N ]  all points
    knorm_ref [1, 1, N ]  precomputed ||x_j||^2 (avoids per-tile recompute)
    o_ref     [1, TQ, N]  2*x_i.x_j - ||x_i||^2 - ||x_j||^2
    """
    f32 = jnp.float32
    xq = xq_ref[0]                                        # [C, TQ]
    xk = xk_ref[0]                                        # [C, N]
    knorm = knorm_ref[0]                                  # [1, N]
    tq = xq.shape[1]
    n = xk.shape[1]

    qq = jnp.sum(xq * xq, axis=0, keepdims=True)          # [1, TQ]  ||x_i||^2

    # Fold both norm corrections into the matmul via an 8-row augmentation
    # block (tile-aligned, so the sublane concat is trivial):
    #   extra_q row0 = -qq, row1 = -1, rest 0
    #   extra_k row0 =  1,  row1 = knorm, rest 0
    rid_q = jax.lax.broadcasted_iota(jnp.int32, (8, tq), 0)
    rid_k = jax.lax.broadcasted_iota(jnp.int32, (8, n), 0)
    extra_q = jnp.where(rid_q == 0, -qq, jnp.where(rid_q == 1, -1.0, 0.0))
    extra_k = jnp.where(rid_k == 0, 1.0, jnp.where(rid_k == 1, knorm, 0.0))

    xq_aug = jnp.concatenate([2.0 * xq, extra_q], axis=0)  # [C+8, TQ]
    xk_aug = jnp.concatenate([xk, extra_k], axis=0)        # [C+8, N]

    # o[t, j] = 2*<x_t, x_j> - ||x_t||^2 - ||x_j||^2
    o_ref[0] = jax.lax.dot_general(
        xq_aug, xk_aug, (((0,), (0,)), ((), ())), preferred_element_type=f32)


def lsa_kernel(cf_ref, cfp_ref, kfp_ref,
               wkvq_ref, hh_ref, ws_ref,
               out_ref, *, c, knum, att_eps, ln_eps):
    """One point tile.  Channels on sublanes, TP points on lanes.

    cf_ref    [C,   TP]  f32  raw center features (MLP concat + residual)
    cfp_ref   [C,   TP]  bf16 center features + positional encoding
    kfp_ref   [K*C, TP]  bf16 kNN neighbour features + positional encoding
    wkvq_ref  [(2K+1)C, (K+1)C] bf16 block-structured fused k|v|q projection^T
    hh_ref    [KC, KC]   bf16 per-neighbour same-head mask  kron(I_K, Hmat)
    ws_ref    [2C, 8C]   f32  slab: w1^T | w2^T | wmerge^T | LN params
    """
    f32 = jnp.float32
    bf16 = jnp.bfloat16
    kc = knum * c

    def mm(a, b):
        # bf16 MXU operands (native on all generations), f32 accumulation.
        return jnp.dot(a.astype(bf16), b.astype(bf16), preferred_element_type=f32)

    def fmap(z):                        # elu(z) + 1, in f32 on the VPU/EUP
        return jnp.where(z > 0.0, z + 1.0, jnp.exp(jnp.minimum(z, 0.0)))

    def sum_k(x):                       # [K*C, TP] -> [C, TP] via unrolled VPU adds
        acc = x[0:c, :]
        for k in range(1, knum):
            acc = acc + x[k * c:(k + 1) * c, :]
        return acc

    cf = cf_ref[...]                    # f32
    cfp = cfp_ref[...]                  # bf16
    kfp = kfp_ref[...]                  # bf16

    # static views into the packed small-weight slab
    ws = ws_ref[...]
    w1_t = ws[:, 0:2 * c]               # [2C, 2C]
    w2_t = ws[0:c, 2 * c:4 * c]         # [C, 2C]
    wm_t = ws[0:c, 4 * c:5 * c]         # [C, C]
    g1 = ws[0:c, 5 * c + 0:5 * c + 1]   # [C, 1]
    b1 = ws[0:c, 5 * c + 1:5 * c + 2]
    g2 = ws[0:c, 5 * c + 2:5 * c + 3]
    b2 = ws[0:c, 5 * c + 3:5 * c + 4]

    # fused k|v|q projection: one contraction-(K+1)C matmul (q folded in)
    kvq_in = jnp.concatenate([kfp, cfp], axis=0)          # [(K+1)C, TP] bf16
    kvq = mm(wkvq_ref[...], kvq_in)                       # [(2K+1)C, TP] f32
    keyf = fmap(kvq[0:kc, :])                             # [KC, TP]   elu(k) + 1
    val = kvq[kc:2 * kc, :]                               # [KC, TP]
    q = fmap(kvq[2 * kc:2 * kc + c, :])                   # [C, TP]    elu(q) + 1

    # replicate q to every neighbour slot on sublanes (VPU copies, no MXU push)
    qrep = jnp.concatenate([q] * knum, axis=0)            # [KC, TP]

    # LinearAttention with query length 1: per-(neighbour, head) scores,
    # broadcast back over each head's channels by hh (a dense contraction-KC
    # matmul, well-utilized on the MXU).
    score = mm(hh_ref[...], qrep * keyf)                  # [KC, TP]

    # neighbour sums as unrolled sublane-slice adds (was two skinny MXU matmuls)
    zden = sum_k(score)                                   # [C, TP]
    num = sum_k(score * val)                              # [C, TP]
    zc = pl.reciprocal(zden + att_eps, approx=True)       # EUP slot
    msg = num * zc                                        # ( /v_length * v_length cancels )

    message = mm(wm_t, msg)                               # merge_knn

    def layer_norm(z, g, b):
        mu = jnp.mean(z, axis=0, keepdims=True)
        var = jnp.mean((z - mu) ** 2, axis=0, keepdims=True)
        return (z - mu) * jax.lax.rsqrt(var + ln_eps) * g + b

    message = layer_norm(message, g1, b1)                 # norm1_knn

    # mlp_knn(cat([feat, message])): single contraction-2C matmul on a
    # tile-aligned sublane concat.
    cat = jnp.concatenate([cf, message], axis=0)          # [2C, TP]
    hidden = jnp.maximum(mm(w1_t, cat), 0.0)              # [2C, TP]
    message = mm(w2_t, hidden)                            # [C, TP]
    message = layer_norm(message, g2, b2)                 # norm2_knn

    out_ref[...] = cf + message                           # residual, lane-dense store


# ------------------------------- wrappers ------------------------------------
def pairwise_neg_sqdist(search_feat):
    """search_feat [B, C, N] -> negative squared pairwise distances [B, N, N]."""
    Bx, C, N = search_feat.shape
    assert N % TQ_PD == 0
    knorm = jnp.sum(search_feat * search_feat, axis=1, keepdims=True)  # [B, 1, N]
    return pl.pallas_call(
        pdist_kernel,
        out_shape=jax.ShapeDtypeStruct((Bx, N, N), jnp.float32),
        grid=(Bx, N // TQ_PD),
        in_specs=[
            pl.BlockSpec((1, C, TQ_PD), lambda b, i: (b, 0, i)),
            pl.BlockSpec((1, C, N), lambda b, i: (b, 0, 0)),
            pl.BlockSpec((1, 1, N), lambda b, i: (b, 0, 0)),
        ],
        out_specs=pl.BlockSpec((1, TQ_PD, N), lambda b, i: (b, i, 0)),
        compiler_params=pltpu.CompilerParams(
            dimension_semantics=("parallel", "parallel")),
    )(search_feat, search_feat, knorm)


def compute_knn_idx(search_feat, knum):
    pd = pairwise_neg_sqdist(search_feat)
    # TODO(synk): top-k selection has no clean Pallas TPU primitive; stays in XLA.
    return jax.lax.top_k(pd, knum)[1]                     # [B, N, k]


def pack_params(params):
    """Host-side packing of the module weights into lane/MXU-friendly operands."""
    C, K, H = D_MODEL, KNUM, NHEAD
    dim = C // H
    f32 = jnp.float32
    kc = K * C
    eye_k = jnp.eye(K, dtype=f32)
    head = jnp.arange(C) // dim
    hmat = (head[:, None] == head[None, :]).astype(f32)              # same-head mask

    # fused k|v|q projection (transposed), block-diagonal over neighbours,
    # with the q projection folded in as a (K+1)-th input slot.
    w_kvq = jnp.zeros((2 * kc + C, kc + C), f32)
    w_kvq = w_kvq.at[0:kc, 0:kc].set(jnp.kron(eye_k, params["wk"].T))
    w_kvq = w_kvq.at[kc:2 * kc, 0:kc].set(jnp.kron(eye_k, params["wv"].T))
    w_kvq = w_kvq.at[2 * kc:2 * kc + C, kc:kc + C].set(params["wq"].T)

    hh = jnp.kron(eye_k, hmat)                                       # [KC, KC]

    # small weights + LayerNorm params packed into one (2C, 8C) = (32,128) slab
    ws = jnp.zeros((2 * C, 8 * C), f32)
    ws = ws.at[:, 0:2 * C].set(params["w1"].T)                       # w1^T
    ws = ws.at[:C, 2 * C:4 * C].set(params["w2"].T)                  # w2^T
    ws = ws.at[:C, 4 * C:5 * C].set(params["wmerge"].T)              # wmerge^T
    ws = ws.at[:C, 5 * C + 0].set(params["g1"][0])                   # LN gamma/beta
    ws = ws.at[:C, 5 * C + 1].set(params["b1"][0])
    ws = ws.at[:C, 5 * C + 2].set(params["g2"][0])
    ws = ws.at[:C, 5 * C + 3].set(params["b2"][0])
    return dict(w_kvq_t=w_kvq.astype(jnp.bfloat16),                  # bf16 MXU operands
                hh=hh.astype(jnp.bfloat16),
                ws=ws)                                               # f32 (holds LN params)


def local_self_attention_forward(search_feat, search_xyz, params, idx=None):
    Bx, C, N = search_feat.shape
    K = KNUM
    P = Bx * N
    assert C == D_MODEL and POS_SIZE == D_MODEL
    assert P % TP == 0 and TP % 128 == 0 and (K * C) % 8 == 0

    if idx is None:
        idx = compute_knn_idx(search_feat, K)

    feat_t = jnp.transpose(search_feat, (0, 2, 1))                   # [B, N, C]

    # pos-MLP hoisted out of the kernel: pos_mlp(gather(xyz)) == gather(pos_mlp(xyz)),
    # so it runs once per point (not KNUM times) and never at lane-width 3.
    pos = jnp.maximum(search_xyz @ params["wp1"] + params["bp1"], 0.0)
    pos = pos @ params["wp2"] + params["bp2"]                        # [B, N, C]
    # bf16 here halves the HBM traffic of the gather + transpose + kernel read
    # of the dominant (K-times expanded) operand; MXU accumulation stays f32.
    feat_pos = (feat_t + pos).astype(jnp.bfloat16)

    # kNN gather of the pos-augmented features (get_graph_feature + pos add).
    # TODO(synk): at production sizes, fuse this gather into the kernel with a
    # scalar-prefetched idx table + manual DMA (and land it directly in the
    # [K*C, P] channel-major layout) instead of materializing the expanded copy
    # in HBM and transposing it.
    kf_pos = jax.vmap(lambda f, i: f[i])(feat_pos, idx)              # [B, N, K, C] bf16

    # transposed, lane-dense layout: channels/neighbours on sublanes, points on lanes
    cf_t = jnp.transpose(search_feat, (1, 0, 2)).reshape(C, P)       # [C, P]   f32
    cfp_t = jnp.transpose(feat_pos, (2, 0, 1)).reshape(C, P)         # [C, P]   bf16
    kfp_t = jnp.transpose(kf_pos, (2, 3, 0, 1)).reshape(K * C, P)    # [K*C, P] bf16

    w = pack_params(params)
    weight_arrs = [w["w_kvq_t"], w["hh"], w["ws"]]
    weight_specs = [pl.BlockSpec(a.shape, lambda i: (0, 0)) for a in weight_arrs]

    kernel = functools.partial(lsa_kernel, c=C, knum=K,
                               att_eps=ATT_EPS, ln_eps=LN_EPS)
    out_t = pl.pallas_call(
        kernel,
        out_shape=jax.ShapeDtypeStruct((C, P), jnp.float32),
        grid=(P // TP,),
        in_specs=[
            pl.BlockSpec((C, TP), lambda i: (0, i)),
            pl.BlockSpec((C, TP), lambda i: (0, i)),
            pl.BlockSpec((K * C, TP), lambda i: (0, i)),
        ] + weight_specs,
        out_specs=pl.BlockSpec((C, TP), lambda i: (0, i)),
        compiler_params=pltpu.CompilerParams(
            dimension_semantics=("parallel",)),
    )(cf_t, cfp_t, kfp_t, *weight_arrs)

    return jnp.transpose(out_t.reshape(C, Bx, N), (1, 0, 2))         # [B, C, N]


# -------------------------- pure-JAX reference --------------------------------
def ref_forward(search_feat, search_xyz, params, idx):
    Bx, C, N = search_feat.shape
    P = Bx * N
    K = KNUM
    feat_t = jnp.transpose(search_feat, (0, 2, 1))
    fea_knn = jax.vmap(lambda f, i: f[i])(feat_t, idx)
    xyz_knn = jax.vmap(lambda f, i: f[i])(search_xyz, idx)

    cf = feat_t.reshape(P, 1, C)
    kf = fea_knn.reshape(P, K, C)
    cx = search_xyz.reshape(P, 1, 3)
    kx = xyz_knn.reshape(P, K, 3)

    def pos_mlp(z):
        h = jax.nn.relu(z @ params["wp1"] + params["bp1"])
        return h @ params["wp2"] + params["bp2"]

    cf_pos = cf + pos_mlp(cx)
    kf_pos = kf + pos_mlp(kx)

    dim = C // NHEAD
    q = (cf_pos @ params["wq"]).reshape(P, 1, NHEAD, dim)
    k_ = (kf_pos @ params["wk"]).reshape(P, K, NHEAD, dim)
    v = (kf_pos @ params["wv"]).reshape(P, K, NHEAD, dim)

    def fmap(z):
        return jnp.where(z > 0.0, z, jnp.exp(jnp.minimum(z, 0.0)) - 1.0) + 1.0

    Q, Kf = fmap(q), fmap(k_)
    vals = v / K
    KV = jnp.einsum("nshd,nshv->nhdv", Kf, vals)
    Z = 1.0 / (jnp.einsum("nlhd,nhd->nlh", Q, Kf.sum(axis=1)) + ATT_EPS)
    out = jnp.einsum("nlhd,nhdv,nlh->nlhv", Q, KV, Z) * K

    message = out.reshape(P, 1, C) @ params["wmerge"]

    def ln(z, g, b):
        mu = jnp.mean(z, -1, keepdims=True)
        var = jnp.mean((z - mu) ** 2, -1, keepdims=True)
        return (z - mu) / jnp.sqrt(var + LN_EPS) * g + b

    message = ln(message, params["g1"], params["b1"])
    cat = jnp.concatenate([cf, message], axis=-1)
    h = jax.nn.relu(cat @ params["w1"])
    message = h @ params["w2"]
    message = ln(message, params["g2"], params["b2"])
    return jnp.transpose((cf + message).reshape(Bx, N, C), (0, 2, 1))


# ------------------------------- parameters -----------------------------------
def init_params(key):
    keys = jax.random.split(key, 10)
    s = 0.1
    nrm = lambda k, shp: s * jax.random.normal(k, shp, jnp.float32)
    return dict(
        wp1=nrm(keys[0], (3, POS_SIZE)),
        bp1=nrm(keys[1], (1, POS_SIZE)),
        wp2=nrm(keys[2], (POS_SIZE, POS_SIZE)),
        bp2=nrm(keys[3], (1, POS_SIZE)),
        wq=nrm(keys[4], (D_MODEL, D_MODEL)),
        wk=nrm(keys[5], (D_MODEL, D_MODEL)),
        wv=nrm(keys[6], (D_MODEL, D_MODEL)),
        wmerge=nrm(keys[7], (D_MODEL, D_MODEL)),
        w1=nrm(keys[8], (2 * D_MODEL, 2 * D_MODEL)),
        w2=nrm(keys[9], (2 * D_MODEL, D_MODEL)),
        g1=jnp.ones((1, D_MODEL), jnp.float32),
        b1=jnp.zeros((1, D_MODEL), jnp.float32),
        g2=jnp.ones((1, D_MODEL), jnp.float32),
        b2=jnp.zeros((1, D_MODEL), jnp.float32),
    )


# --------------------------------- main ----------------------------------------
if __name__ == "__main__":
    key = jax.random.PRNGKey(0)
    k_feat, k_xyz, k_par = jax.random.split(key, 3)
    search_feat = jax.random.normal(k_feat, (B, D_MODEL, NS), jnp.float32)
    search_xyz = jax.random.normal(k_xyz, (B, NS, 3), jnp.float32)
    params = init_params(k_par)

    # Pallas pairwise-distance kernel vs the torch knn() formula in plain JAX
    pd_pallas = jax.block_until_ready(pairwise_neg_sqdist(search_feat))
    inner = -2.0 * jnp.einsum("bcn,bcm->bnm", search_feat, search_feat)
    xx = jnp.sum(search_feat ** 2, axis=1, keepdims=True)
    pd_ref = -xx - inner - jnp.transpose(xx, (0, 2, 1))
    np.testing.assert_allclose(np.asarray(pd_pallas), np.asarray(pd_ref),
                               rtol=1e-3, atol=1e-2)

    idx = jax.lax.top_k(pd_pallas, KNUM)[1]

    out = jax.block_until_ready(
        local_self_attention_forward(search_feat, search_xyz, params, idx=idx))
    assert out.shape == (B, D_MODEL, NS)

    ref = jax.block_until_ready(ref_forward(search_feat, search_xyz, params, idx))
    # tolerance loosened vs rev 2: bf16 MXU operands (f32 accumulation) + approx
    # reciprocal introduce ~1e-2-level deviation from the all-f32 reference.
    np.testing.assert_allclose(np.asarray(out), np.asarray(ref),
                               rtol=5e-2, atol=5e-2)

    print("KERNEL_OK")
</pallas_src>

<mosaic_0001>
module attributes {stable_mosaic.version = 11 : i64} {
  func.func @pdist_kernel(%arg0: i32, %arg1: i32, %arg2: memref<1x16x128xf32, #tpu.memory_space<vmem>>, %arg3: memref<1x16x512xf32, #tpu.memory_space<vmem>>, %arg4: memref<1x1x512xf32, #tpu.memory_space<vmem>>, %arg5: memref<1x128x512xf32, #tpu.memory_space<vmem>>) attributes {dimension_semantics = [#tpu.dimension_semantics<parallel>, #tpu.dimension_semantics<parallel>], iteration_bounds = array<i64: 2, 4>, scalar_prefetch = 0 : i64, scratch_operands = 0 : i64, tpu.core_type = #tpu.core_type<tc>, window_params = [{transform_indices = @transform_0, window_bounds = array<i64: 1, 16, 128>}, {transform_indices = @transform_1, window_bounds = array<i64: 1, 16, 512>}, {transform_indices = @transform_2, window_bounds = array<i64: 1, 1, 512>}, {transform_indices = @transform_3, window_bounds = array<i64: 1, 128, 512>}]} {
    %c0 = arith.constant 0 : index
    %c0_0 = arith.constant 0 : index
    %c0_1 = arith.constant 0 : index
    %0 = vector.load %arg2[%c0, %c0_0, %c0_1] : memref<1x16x128xf32, #tpu.memory_space<vmem>>, vector<1x16x128xf32>
    %1 = vector.shape_cast %0 : vector<1x16x128xf32> to vector<16x128xf32>
    %c0_2 = arith.constant 0 : index
    %c0_3 = arith.constant 0 : index
    %c0_4 = arith.constant 0 : index
    %2 = vector.load %arg3[%c0_2, %c0_3, %c0_4] : memref<1x16x512xf32, #tpu.memory_space<vmem>>, vector<1x16x512xf32>
    %3 = vector.shape_cast %2 : vector<1x16x512xf32> to vector<16x512xf32>
    %c0_5 = arith.constant 0 : index
    %c0_6 = arith.constant 0 : index
    %c0_7 = arith.constant 0 : index
    %4 = vector.load %arg4[%c0_5, %c0_6, %c0_7] : memref<1x1x512xf32, #tpu.memory_space<vmem>>, vector<1x1x512xf32>
    %5 = vector.shape_cast %4 : vector<1x1x512xf32> to vector<1x512xf32>
    %6 = arith.mulf %1, %1 : vector<16x128xf32>
    %cst = arith.constant dense<0.000000e+00> : vector<128xf32>
    %7 = vector.multi_reduction <add>, %6, %cst [0] : vector<16x128xf32> to vector<128xf32>
    %8 = vector.shape_cast %7 : vector<128xf32> to vector<1x128xf32>
    %9 = tpu.iota {dimensions = array<i32: 0>} : vector<8x128xi32>
    %10 = tpu.iota {dimensions = array<i32: 0>} : vector<8x512xi32>
    %c0_i32 = arith.constant 0 : i32
    %11 = vector.broadcast %c0_i32 : i32 to vector<8x128xi32>
    %12 = arith.cmpi eq, %9, %11 : vector<8x128xi32>
    %cst_8 = arith.constant 0.000000e+00 : f32
    %13 = vector.broadcast %cst_8 : f32 to vector<1x128xf32>
    %14 = arith.subf %13, %8 : vector<1x128xf32>
    %c1_i32 = arith.constant 1 : i32
    %15 = vector.broadcast %c1_i32 : i32 to vector<8x128xi32>
    %16 = arith.cmpi eq, %9, %15 : vector<8x128xi32>
    %cst_9 = arith.constant -1.000000e+00 : f32
    %cst_10 = arith.constant 0.000000e+00 : f32
    %17 = vector.broadcast %cst_9 : f32 to vector<8x128xf32>
    %18 = vector.broadcast %cst_10 : f32 to vector<8x128xf32>
    %19 = arith.select %16, %17, %18 : vector<8x128xi1>, vector<8x128xf32>
    %20 = vector.shape_cast %14 : vector<1x128xf32> to vector<1x128xf32>
    %21 = vector.broadcast %20 : vector<1x128xf32> to vector<8x128xf32>
    %22 = arith.select %12, %21, %19 : vector<8x128xi1>, vector<8x128xf32>
    %c0_i32_11 = arith.constant 0 : i32
    %23 = vector.broadcast %c0_i32_11 : i32 to vector<8x512xi32>
    %24 = arith.cmpi eq, %10, %23 : vector<8x512xi32>
    %c1_i32_12 = arith.constant 1 : i32
    %25 = vector.broadcast %c1_i32_12 : i32 to vector<8x512xi32>
    %26 = arith.cmpi eq, %10, %25 : vector<8x512xi32>
    %cst_13 = arith.constant 0.000000e+00 : f32
    %27 = vector.shape_cast %5 : vector<1x512xf32> to vector<1x512xf32>
    %28 = vector.broadcast %27 : vector<1x512xf32> to vector<8x512xf32>
    %29 = vector.broadcast %cst_13 : f32 to vector<8x512xf32>
    %30 = arith.select %26, %28, %29 : vector<8x512xi1>, vector<8x512xf32>
    %cst_14 = arith.constant 1.000000e+00 : f32
    %31 = vector.broadcast %cst_14 : f32 to vector<8x512xf32>
    %32 = arith.select %24, %31, %30 : vector<8x512xi1>, vector<8x512xf32>
    %cst_15 = arith.constant 2.000000e+00 : f32
    %33 = vector.broadcast %cst_15 : f32 to vector<16x128xf32>
    %34 = arith.mulf %33, %1 : vector<16x128xf32>
    %35 = tpu.concatenate %34, %22 in 0 : vector<16x128xf32>, vector<8x128xf32> -> vector<24x128xf32>
    %36 = tpu.concatenate %3, %32 in 0 : vector<16x512xf32>, vector<8x512xf32> -> vector<24x512xf32>
    %cst_16 = arith.constant dense<0.000000e+00> : vector<128x512xf32>
    %37 = tpu.matmul %35, %36, %cst_16 {dimension_numbers = #tpu.dot_dimension_numbers<[0], [0], [1], [1], [0, 1, 1, 1], [], []>} : vector<24x128xf32>, vector<24x512xf32>, vector<128x512xf32> -> vector<128x512xf32>
    %c0_17 = arith.constant 0 : index
    %c0_18 = arith.constant 0 : index
    %c0_19 = arith.constant 0 : index
    %38 = vector.load %arg5[%c0_17, %c0_18, %c0_19] : memref<1x128x512xf32, #tpu.memory_space<vmem>>, vector<1x128x512xf32>
    %39 = vector.shape_cast %38 : vector<1x128x512xf32> to vector<128x512xf32>
    %40 = vector.shape_cast %37 : vector<128x512xf32> to vector<1x128x512xf32>
    tpu.vector_store %arg5[%c0_17, %c0_18, %c0_19], %40 {strides = array<i32>} : memref<1x128x512xf32, #tpu.memory_space<vmem>>, vector<1x128x512xf32>,
    return
  }
  func.func @transform_0(%arg0: i32, %arg1: i32) -> (i32, i32, i32) {
    %c0_i32 = arith.constant 0 : i32
    %c0_i32_0 = arith.constant 0 : i32
    return %arg0, %c0_i32, %arg1 : i32, i32, i32
  }
  func.func @transform_1(%arg0: i32, %arg1: i32) -> (i32, i32, i32) {
    %c0_i32 = arith.constant 0 : i32
    %c0_i32_0 = arith.constant 0 : i32
    %c0_i32_1 = arith.constant 0 : i32
    return %arg0, %c0_i32, %c0_i32_0 : i32, i32, i32
  }
  func.func @transform_2(%arg0: i32, %arg1: i32) -> (i32, i32, i32) {
    %c0_i32 = arith.constant 0 : i32
    %c0_i32_0 = arith.constant 0 : i32
    %c0_i32_1 = arith.constant 0 : i32
    return %arg0, %c0_i32, %c0_i32_0 : i32, i32, i32
  }
  func.func @transform_3(%arg0: i32, %arg1: i32) -> (i32, i32, i32) {
    %c0_i32 = arith.constant 0 : i32
    %c0_i32_0 = arith.constant 0 : i32
    return %arg0, %arg1, %c0_i32 : i32, i32, i32
  }
}

</mosaic_0001>

<llo_original>
// kernel: tpu_custom_call.1
$region0: #{tpu_custom_call.1}
  #allocation0 [shape = 'u32[]', space=smem, size = 0x4, offset = 0x4, fixed_abs, tag = 'smem constant byte address 0x4 - core index']
  #allocation1 [shape = 'u32[144,128]{1,0:T(1,128)}', space=vmem, size = 0x12000, scoped, tag = 'internal scratch']
  %s0 = inlined_call_operand.hbm [shape: f32[2,16,512], index: 0, kind: input, shape index: {}]
  %s1 = inlined_call_operand.hbm [shape: f32[2,16,512], index: 1, kind: input, shape index: {}]
  %s2 = inlined_call_operand.hbm [shape: f32[2,1,512], index: 2, kind: input, shape index: {}]
  %s3 = inlined_call_operand.hbm [shape: f32[2,512,512], index: 3, kind: output, shape index: {}]
  %s4 = sld [smem:[#allocation0]]
  $region57: #{tpu_custom_call.1} parent=0
    _
  %s6 = ssub.s32 1, %s4
  %s7 = scalar_select 0, %s6, %s4
  $region1: #{tpu_custom_call.1} parent=0
    #allocation2 [shape = 'u8[16384]{0}', space=vmem, size = 0x4000, scoped, tag = 'input window, operand 0']
    #allocation3 [shape = 's32[2]{0}', space=sflag, size = 0x8, scoped, tag = 'scoped memory for tpu_custom_call.1']
    #allocation4 [shape = 's32[2]{0}', space=sflag, size = 0x8, scoped, tag = 'scoped memory for tpu_custom_call.1']
    #allocation5 [shape = 'u8[65536]{0}', space=vmem, size = 0x10000, scoped, tag = 'input window, operand 1']
    #allocation6 [shape = 's32[2]{0}', space=sflag, size = 0x8, scoped, tag = 'scoped memory for tpu_custom_call.1']
    #allocation7 [shape = 'u8[4096]{0}', space=vmem, size = 0x1000, scoped, tag = 'input window, operand 2']
    #allocation8 [shape = 'u8[524288]{0}', space=vmem, size = 0x80000, scoped, tag = 'output window, operand 0']
    %8 = vsyncpa [#allocation3], 0
    %s9 = scalar_lea.sflag [#allocation3], 1
    %10 = vsyncpa %s9, 0
    %11 = vsyncpa [#allocation6], 0
    %s12 = scalar_lea.sflag [#allocation6], 1
    %13 = vsyncpa %s12, 0
    %14 = vsyncpa [#allocation4], 0
    %s15 = scalar_lea.sflag [#allocation4], 1
    %16 = vsyncpa %s15, 0
    loop: start=0, step=1, limit=10
    $region2: #{tpu_custom_call.1} parent=1 // loop_pre_header
      _
    $region3: #{tpu_custom_call.1} parent=1 // loop_header
      %s18 = sphi 0, %s22
      %p19 = scmp.ge.s32.totalorder %s18, 10
      %s25 = sphi 0, %s37
      %s26 = sphi 0, %s33
      %s27 = sphi 0, %s25
      %s28 = sphi 0, %s26
      %s29 = sphi 0, %s27
      %s30 = sphi 0, %s28
      %s42 = sphi 0, %s44
      %s45 = sphi 0, %s42
      %s46 = sphi 0, %s45
      %s62 = sphi 0, %s46
      %s68 = sphi 0, %s70
      %s71 = sphi 0, %s68
      %s72 = sphi 0, %s71
      %s88 = sphi 0, %s72
      %s94 = sphi 0, %s96
      %s97 = sphi 0, %s94
      %s98 = sphi 0, %s97
      %s114 = sphi 0, %s98
      %s122 = sphi 0, %s124
      %s125 = sphi 0, %s122
      %s126 = sphi 0, %s125
      %s142 = sphi 0, %s126
    $region4: #{tpu_custom_call.1} parent=1 // loop_header_branch
      %21 = sbr.rel (%p19) target = $region8
    $region5: #{tpu_custom_call.1} parent=1 // loop_body
      %s23 = ssub.s32 %s18, 1
      %s24 = ssub.s32 %s18, 2
      %s31 = sadd.s32 1, %s26
      %p32 = scmp.ge.s32.totalorder %s31, 4
      %s33 = scalar_select %p32, 0, %s31
      %s34 = sadd.s32 1, %s25
      %s35 = scalar_select %p32, %s34, %s25
      %p36 = scmp.ge.s32.totalorder %s35, 2
      %s37 = scalar_select %p36, 0, %s35
      %s38 = ssub.s32 %s25, %s37
      %s39 = ssub.s32 %s26, %s33
      %s40 = sor.u32 %s38, %s39
      %p41 = scmp.eq.s32.totalorder %s40, 0
      %s43 = sadd.s32 %s42, 1
      %s44 = scalar_select %p41, %s42, %s43
      %p47 = pneg %p41
      %p48 = scmp.eq.s32.totalorder %s18, 7
      %p49 = por %p47, %p48
      %p50 = scmp.ne.s32.totalorder %s42, %s45
      %p51 = scmp.eq.s32.totalorder %s18, 0
      %p52 = por %p50, %p51
      %p53 = scmp.ne.s32.totalorder %s42, %s45
      %p54 = scmp.eq.s32.totalorder %s23, 7
      %p55 = por %p53, %p54
      %p56 = scmp.ne.s32.totalorder %s45, %s46
      %p57 = scmp.eq.s32.totalorder %s23, 0
      %p58 = por %p56, %p57
      %p59 = scmp.ne.s32.totalorder %s45, %s46
      %p60 = scmp.eq.s32.totalorder %s24, 7
      %p61 = por %p59, %p60
      %p63 = scmp.ne.s32.totalorder %s46, %s62
      %p64 = scmp.eq.s32.totalorder %s24, 0
      %p65 = por %p63, %p64
      %s66 = ssub.s32 %s25, %s37
      %p67 = scmp.eq.s32.totalorder %s66, 0
      %s69 = sadd.s32 %s68, 1
      %s70 = scalar_select %p67, %s68, %s69
      %p73 = pneg %p67
      %p74 = scmp.eq.s32.totalorder %s18, 7
      %p75 = por %p73, %p74
      %p76 = scmp.ne.s32.totalorder %s68, %s71
      %p77 = scmp.eq.s32.totalorder %s18, 0
      %p78 = por %p76, %p77
      %p79 = scmp.ne.s32.totalorder %s68, %s71
      %p80 = scmp.eq.s32.totalorder %s23, 7
      %p81 = por %p79, %p80
      %p82 = scmp.ne.s32.totalorder %s71, %s72
      %p83 = scmp.eq.s32.totalorder %s23, 0
      %p84 = por %p82, %p83
      %p85 = scmp.ne.s32.totalorder %s71, %s72
      %p86 = scmp.eq.s32.totalorder %s24, 7
      %p87 = por %p85, %p86
      %p89 = scmp.ne.s32.totalorder %s72, %s88
      %p90 = scmp.eq.s32.totalorder %s24, 0
      %p91 = por %p89, %p90
      %s92 = ssub.s32 %s25, %s37
      %p93 = scmp.eq.s32.totalorder %s92, 0
      %s95 = sadd.s32 %s94, 1
      %s96 = scalar_select %p93, %s94, %s95
      %p99 = pneg %p93
      %p100 = scmp.eq.s32.totalorder %s18, 7
      %p101 = por %p99, %p100
      %p102 = scmp.ne.s32.totalorder %s94, %s97
      %p103 = scmp.eq.s32.totalorder %s18, 0
      %p104 = por %p102, %p103
      %p105 = scmp.ne.s32.totalorder %s94, %s97
      %p106 = scmp.eq.s32.totalorder %s23, 7
      %p107 = por %p105, %p106
      %p108 = scmp.ne.s32.totalorder %s97, %s98
      %p109 = scmp.eq.s32.totalorder %s23, 0
      %p110 = por %p108, %p109
      %p111 = scmp.ne.s32.totalorder %s97, %s98
      %p112 = scmp.eq.s32.totalorder %s24, 7
      %p113 = por %p111, %p112
      %p115 = scmp.ne.s32.totalorder %s98, %s114
      %p116 = scmp.eq.s32.totalorder %s24, 0
      %p117 = por %p115, %p116
      %s118 = ssub.s32 %s25, %s37
      %s119 = ssub.s32 %s26, %s33
      %s120 = sor.u32 %s118, %s119
      %p121 = scmp.eq.s32.totalorder %s120, 0
      %s123 = sadd.s32 %s122, 1
      %s124 = scalar_select %p121, %s122, %s123
      %p127 = pneg %p121
      %p128 = scmp.eq.s32.totalorder %s18, 7
      %p129 = por %p127, %p128
      %p130 = scmp.ne.s32.totalorder %s122, %s125
      %p131 = scmp.eq.s32.totalorder %s18, 0
      %p132 = por %p130, %p131
      %p133 = scmp.ne.s32.totalorder %s122, %s125
      %p134 = scmp.eq.s32.totalorder %s23, 7
      %p135 = por %p133, %p134
      %p136 = scmp.ne.s32.totalorder %s125, %s126
      %p137 = scmp.eq.s32.totalorder %s23, 0
      %p138 = por %p136, %p137
      %p139 = scmp.ne.s32.totalorder %s125, %s126
      %p140 = scmp.eq.s32.totalorder %s24, 7
      %p141 = por %p139, %p140
      %p143 = scmp.ne.s32.totalorder %s126, %s142
      %p144 = scmp.eq.s32.totalorder %s24, 0
      %p145 = por %p143, %p144
      %p146 = scmp.le.s32.totalorder 1, %s18
      %p147 = scmp.lt.s32.totalorder %s18, 9
      %p148 = pnand %p146, %p147
      %p149 = pneg %p148
      // Predicated region
      $region9: #{tpu_custom_call.1} parent=5 // pred_check
        _
      $region10: #{tpu_custom_call.1} parent=5 // pred_check_branch
        %151 = sbr.rel (%p148) target = $region12
      $region11: #{tpu_custom_call.1} parent=5 // pred_region
        %s152 = ssub.s32 %s18, 1
      $region12: #{tpu_custom_call.1} parent=5 // pred_fallthru
        _
      %p153 = scmp.lt.s32.totalorder %s18, 8
      // Predicated region
      $region13: #{tpu_custom_call.1} parent=5 // pred_check
        %p154 = pneg %p153
      $region14: #{tpu_custom_call.1} parent=5 // pred_check_branch
        %156 = sbr.rel (%p154) target = $region16
      $region15: #{tpu_custom_call.1} parent=5 // pred_region
        // Predicated region
        $region17: #{tpu_custom_call.1} parent=15 // pred_check
          %p157 = pneg %p52
        $region18: #{tpu_custom_call.1} parent=15 // pred_check_branch
          %159 = sbr.rel (%p157) target = $region20
        $region19: #{tpu_custom_call.1} parent=15 // pred_region
          %s160 = sand.u32 %s42, 1
          %s161 = scalar_lea.sflag [#allocation3], %s160
          %s162 = sand.u32 %s42, 1
          %s163 = smul.addr %s162, 16
          %s164 = scalar_lea.vmem [#allocation2], %s163
          %s166 = ssub.s32 256, 256
          %167 = vsyncadd %s161, %s166
          %s168 = smul.addr %s25, 8
          %s169 = sadd.s32 %s26, %s168
          %s170 = smul.addr %s169, 128
          %s171 = scalar_lea.hbm %s0, %s170
          %s172 = sshll.u32 %s164, 4
          %s173 = int_to_ptr.vmem [resolvable:$true] %s172
          %178 = dma.hbm_to_vmem [thread:$0]  %s171, 256, %s173, %s161, 512, 128, 8
        $region20: #{tpu_custom_call.1} parent=15 // pred_fallthru
          _
        // Predicated region
        $region21: #{tpu_custom_call.1} parent=15 // pred_check
          %p179 = pneg %p78
        $region22: #{tpu_custom_call.1} parent=15 // pred_check_branch
          %181 = sbr.rel (%p179) target = $region24
        $region23: #{tpu_custom_call.1} parent=15 // pred_region
          %s182 = sand.u32 %s18, 1
          %s183 = scalar_lea.sflag [#allocation6], %s182
          %s184 = sand.u32 %s68, 1
          %s185 = smul.addr %s184, 64
          %s186 = scalar_lea.vmem [#allocation5], %s185
          %s188 = ssub.s32 1024, 1024
          %189 = vsyncadd %s183, %s188
          %s190 = smul.addr %s25, 8
          %s191 = smul.addr %s190, 128
          %s192 = scalar_lea.hbm %s1, %s191
          %s193 = sshll.u32 %s186, 4
          %s194 = int_to_ptr.vmem [resolvable:$true] %s193
          %199 = dma.hbm_to_vmem [thread:$0]  %s192, 1024, %s194, %s183, 512, 512, 32
        $region24: #{tpu_custom_call.1} parent=15 // pred_fallthru
          _
        // Predicated region
        $region25: #{tpu_custom_call.1} parent=15 // pred_check
          %p200 = pneg %p104
        $region26: #{tpu_custom_call.1} parent=15 // pred_check_branch
          %202 = sbr.rel (%p200) target = $region28
        $region27: #{tpu_custom_call.1} parent=15 // pred_region
          %s203 = sand.u32 %s18, 1
          %s204 = scalar_lea.sflag [#allocation6], %s203
          %s205 = sand.u32 %s94, 1
          %s206 = smul.addr %s205, 4
          %s207 = scalar_lea.vmem [#allocation7], %s206
          %s209 = ssub.s32 64, 64
          %210 = vsyncadd %s204, %s209
          %s211 = smul.addr %s25, 4
          %s212 = smul.addr %s211, 16
          %s213 = scalar_lea.hbm %s2, %s212
          %s215 = sshll.u32 %s207, 4
          %s216 = int_to_ptr.vmem [resolvable:$true] %s215
          %218 = dma.hbm_to_vmem [thread:$0]  %s213, 64, %s216, %s204
        $region28: #{tpu_custom_call.1} parent=15 // pred_fallthru
          _
      $region16: #{tpu_custom_call.1} parent=5 // pred_fallthru
        _
      %p219 = scmp.le.s32.totalorder 1, %s18
      %p220 = scmp.lt.s32.totalorder %s18, 9
      %p221 = pnand %p219, %p220
      %p222 = pneg %p221
      // Predicated region
      $region29: #{tpu_custom_call.1} parent=5 // pred_check
        _
      $region30: #{tpu_custom_call.1} parent=5 // pred_check_branch
        %224 = sbr.rel (%p221) target = $region32
      $region31: #{tpu_custom_call.1} parent=5 // pred_region
        %s225 = ssub.s32 %s18, 1
        %s226 = sand.u32 %s45, 1
        %s227 = scalar_lea.sflag [#allocation3], %s226
        %s228 = sand.u32 %s45, 1
        %s229 = smul.addr %s228, 16
        %s230 = scalar_lea.vmem [#allocation2], %s229
        // Predicated region
        $region33: #{tpu_custom_call.1} parent=31 // pred_check
          %p231 = pneg %p58
        $region34: #{tpu_custom_call.1} parent=31 // pred_check_branch
          %233 = sbr.rel (%p231) target = $region36
        $region35: #{tpu_custom_call.1} parent=31 // pred_region
          %234 = dma.done %s227, 256
        $region36: #{tpu_custom_call.1} parent=31 // pred_fallthru
          _
        %s235 = sand.u32 %s23, 1
        %s236 = scalar_lea.sflag [#allocation6], %s235
        %s237 = sand.u32 %s71, 1
        %s238 = smul.addr %s237, 64
        %s239 = scalar_lea.vmem [#allocation5], %s238
        // Predicated region
        $region37: #{tpu_custom_call.1} parent=31 // pred_check
          %p240 = pneg %p84
        $region38: #{tpu_custom_call.1} parent=31 // pred_check_branch
          %242 = sbr.rel (%p240) target = $region40
        $region39: #{tpu_custom_call.1} parent=31 // pred_region
          %243 = dma.done %s236, 1024
        $region40: #{tpu_custom_call.1} parent=31 // pred_fallthru
          _
        %s244 = sand.u32 %s23, 1
        %s245 = scalar_lea.sflag [#allocation6], %s244
        %s246 = sand.u32 %s97, 1
        %s247 = smul.addr %s246, 4
        %s248 = scalar_lea.vmem [#allocation7], %s247
        // Predicated region
        $region41: #{tpu_custom_call.1} parent=31 // pred_check
          %p249 = pneg %p110
        $region42: #{tpu_custom_call.1} parent=31 // pred_check_branch
          %251 = sbr.rel (%p249) target = $region44
        $region43: #{tpu_custom_call.1} parent=31 // pred_region
          %252 = dma.done %s245, 64
        $region44: #{tpu_custom_call.1} parent=31 // pred_fallthru
          _
        %s253 = sand.u32 %s45, 1
        %s254 = scalar_lea.sflag [#allocation3], %s253
        %s255 = sand.u32 %s45, 1
        %s256 = smul.addr %s255, 16
        %s257 = scalar_lea.vmem [#allocation2], %s256
        %p258 = pneg %p58
        %p259 = pneg %p55
        %s260 = sand.u32 %s23, 1
        %s261 = scalar_lea.sflag [#allocation6], %s260
        %s262 = sand.u32 %s71, 1
        %s263 = smul.addr %s262, 64
        %s264 = scalar_lea.vmem [#allocation5], %s263
        %p265 = pneg %p84
        %p266 = pneg %p81
        %s267 = sand.u32 %s23, 1
        %s268 = scalar_lea.sflag [#allocation6], %s267
        %s269 = sand.u32 %s97, 1
        %s270 = smul.addr %s269, 4
        %s271 = scalar_lea.vmem [#allocation7], %s270
        %p272 = pneg %p110
        %p273 = pneg %p107
        %p274 = pneg %p138
        %p275 = pneg %p135
        %s276 = sand.u32 %s125, 1
        %s277 = scalar_lea.sflag [#allocation4], %s276
        %s278 = sand.u32 %s125, 1
        %s279 = smul.addr %s278, 512
        %s280 = scalar_lea.vmem [#allocation8], %s279
        %s281 = smul.u32 16, %s28
        %v282 = vld [vmem:[%s230] sm:$0xff]
        %v283 = vld [vmem:[%s230 + $0x8] sm:$0xff]
        %v284 = vld [vmem:[%s239] sm:$0xff]
        %v285 = vld [vmem:[%s239 + $0x8] sm:$0xff]
        %v286 = vld [vmem:[%s239 + $0x10] sm:$0xff]
        %v287 = vld [vmem:[%s239 + $0x18] sm:$0xff]
        %v288 = vld [vmem:[%s239 + $0x20] sm:$0xff]
        %v289 = vld [vmem:[%s239 + $0x28] sm:$0xff]
        %v290 = vld [vmem:[%s239 + $0x30] sm:$0xff]
        %v291 = vld [vmem:[%s239 + $0x38] sm:$0xff]
        %v292 = vld [vmem:[%s248] sm:$0xf]
        %v293 = vmul.f32 %v282, %v282
        %v294 = vmul.f32 %v283, %v283
        %v295 = vadd.f32 %v293, %v294
        %v296 = vrot.slane %v295, 4
        %v297 = vadd.f32 %v295, %v296
        %v298 = vrot.slane %v297, 2
        %v299 = vadd.f32 %v297, %v298
        %v300 = vrot.slane %v299, 1
        %v301 = vadd.f32 %v299, %v300
        %v302 = vlaneseq
        %v303 = vshrl.u32 %v302, 7
        %vm304 = vcmp.eq.s32.totalorder %v303, 0
        %v305 = vsub.f32 0.0, %v301
        %vm306 = vcmp.eq.s32.totalorder %v303, 1
        %v307 = vsel %vm306, -1.0, 0.0
        %v308 = vsel %vm304, %v305, %v307
        %v310 = vlaneseq
        %v311 = vshrl.u32 %v310, 7
        %v312 = vsub.s32 0, %v311
        %v313 = vrot.slane %v292, %v312
        %v314 = vlaneseq
        %v315 = vshrl.u32 %v314, 7
        %v316 = vsub.s32 1, %v315
        %v317 = vrot.slane %v292, %v316
        %v318 = vlaneseq
        %v319 = vshrl.u32 %v318, 7
        %v320 = vsub.s32 2, %v319
        %v321 = vrot.slane %v292, %v320
        %v322 = vlaneseq
        %v323 = vshrl.u32 %v322, 7
        %v324 = vsub.s32 3, %v323
        %v325 = vrot.slane %v292, %v324
        %v330 = vsel %vm306, %v313, 0.0
        %v331 = vsel %vm306, %v317, 0.0
        %v332 = vsel %vm306, %v321, 0.0
        %v333 = vsel %vm306, %v325, 0.0
        %v334 = vsel %vm304, 1.0, %v330
        %v335 = vsel %vm304, 1.0, %v331
        %v336 = vsel %vm304, 1.0, %v332
        %v337 = vsel %vm304, 1.0, %v333
        %v338 = vmul.f32 %v282, 2.0
        %v339 = vmul.f32 %v283, 2.0
        %340 = vxpose.xlu0.b32.start [1/16] %v338, 128
        %341 = vxpose.xlu0.b32.cont [2/16] %v339, 128
        %342 = vxpose.xlu0.b32.cont [3/16] %v308, 128
        %343 = vxpose.xlu0.b32.cont [4/16] 0.0, 128
        %344 = vxpose.xlu0.b32.cont [5/16] 0.0, 128
        %345 = vxpose.xlu0.b32.cont [6/16] 0.0, 128
        %346 = vxpose.xlu0.b32.cont [7/16] 0.0, 128
        %347 = vxpose.xlu0.b32.cont [8/16] 0.0, 128
        %348 = vxpose.xlu0.b32.cont [9/16] 0.0, 128
        %349 = vxpose.xlu0.b32.cont [10/16] 0.0, 128
        %350 = vxpose.xlu0.b32.cont [11/16] 0.0, 128
        %351 = vxpose.xlu0.b32.cont [12/16] 0.0, 128
        %352 = vxpose.xlu0.b32.cont [13/16] 0.0, 128
        %353 = vxpose.xlu0.b32.cont [14/16] 0.0, 128
        %354 = vxpose.xlu0.b32.cont [15/16] 0.0, 128
        %355 = vxpose.xlu0.b32.end [16/16] 0.0, 128
        %v356 = vpop.trf.xlu0
        %v357 = vpop.trf.xlu0
        %v358 = vpop.trf.xlu0
        %v359 = vpop.trf.xlu0
        %v360 = vpop.trf.xlu0
        %v361 = vpop.trf.xlu0
        %v362 = vpop.trf.xlu0
        %v363 = vpop.trf.xlu0
        %v364 = vpop.trf.xlu0
        %v365 = vpop.trf.xlu0
        %v366 = vpop.trf.xlu0
        %v367 = vpop.trf.xlu0
        %v368 = vpop.trf.xlu0
        %v369 = vpop.trf.xlu0
        %v370 = vpop.trf.xlu0
        %v371 = vpop.trf.xlu0
        %vm372 = vcmask 195584
        %v374 = vsel %vm372, %v356, 0
        %v377 = vsel %vm372, %v357, 0
        %v380 = vsel %vm372, %v358, 0
        %v383 = vsel %vm372, %v359, 0
        %v386 = vsel %vm372, %v360, 0
        %v389 = vsel %vm372, %v361, 0
        %v392 = vsel %vm372, %v362, 0
        %v395 = vsel %vm372, %v363, 0
        %v398 = vsel %vm372, %v364, 0
        %v401 = vsel %vm372, %v365, 0
        %v404 = vsel %vm372, %v366, 0
        %v407 = vsel %vm372, %v367, 0
        %v410 = vsel %vm372, %v368, 0
        %v413 = vsel %vm372, %v369, 0
        %v416 = vsel %vm372, %v370, 0
        %v419 = vsel %vm372, %v371, 0
        %421 = vmatprep.subr.mxu0 %v285
        %422 = vmatpush1.msra.mxu0 %v284
        %423 = vmatprep.subr.mxu0 %v289
        %424 = vmatpush1.msra.mxu0 %v288
        %425 = vmatprep.subr.mxu0 %v335
        %426 = vmatpush1.msra.mxu0 %v334
        %427 = vmatprep.subr.mxu0 0.0
        %428 = vmatpush1.msra.mxu0 0.0
        %429 = vmatprep.subr.mxu0 0.0
        %430 = vmatpush1.msra.mxu0 0.0
        %431 = vmatprep.subr.mxu0 0.0
        %432 = vmatpush1.msra.mxu0 0.0
        %433 = vmatprep.subr.mxu0 0.0
        %434 = vmatpush1.msra.mxu0 0.0
        %435 = vmatprep.subr.mxu0 0.0
        %436 = vmatpush1.msra.mxu0 0.0
        %437 = vmatprep.subr.mxu0 0.0
        %438 = vmatpush1.msra.mxu0 0.0
        %439 = vmatprep.subr.mxu0 0.0
        %440 = vmatpush1.msra.mxu0 0.0
        %441 = vmatprep.subr.mxu0 0.0
        %442 = vmatpush1.msra.mxu0 0.0
        %443 = vmatprep.subr.mxu0 0.0
        %444 = vmatpush1.msra.mxu0 0.0
        %445 = vmatprep.subr.mxu0 0.0
        %446 = vmatpush1.msra.mxu0 0.0
        %447 = vmatprep.subr.mxu0 0.0
        %448 = vmatpush1.msra.mxu0 0.0
        %449 = vmatprep.subr.mxu0 0.0
        %450 = vmatpush1.msra.mxu0 0.0
        %451 = vmatprep.subr.mxu0 0.0
        %452 = vmatpush1.msra.mxu0 0.0
        %453 = vmatprep.subr.mxu0 0.0
        %454 = vmatpush1.msra.mxu0 0.0
        %455 = vmatprep.subr.mxu0 0.0
        %456 = vmatpush1.msra.mxu0 0.0
        %457 = vmatprep.subr.mxu0 0.0
        %458 = vmatpush1.msra.mxu0 0.0
        %459 = vmatprep.subr.mxu0 0.0
        %460 = vmatpush1.msra.mxu0 0.0
        %461 = vmatprep.subr.mxu0 0.0
        %462 = vmatpush1.msra.mxu0 0.0
        %463 = vmatprep.subr.mxu0 0.0
        %464 = vmatpush1.msra.mxu0 0.0
        %465 = vmatprep.subr.mxu0 0.0
        %466 = vmatpush1.msra.mxu0 0.0
        %467 = vmatprep.subr.mxu0 0.0
        %468 = vmatpush1.msra.mxu0 0.0
        %469 = vmatprep.subr.mxu0 0.0
        %470 = vmatpush1.msra.mxu0 0.0
        %471 = vmatprep.subr.mxu0 0.0
        %472 = vmatpush1.msra.mxu0 0.0
        %473 = vmatprep.subr.mxu0 0.0
        %474 = vmatpush1.msra.mxu0 0.0
        %475 = vmatprep.subr.mxu0 0.0
        %476 = vmatpush1.msra.mxu0 0.0
        %477 = vmatprep.subr.mxu0 0.0
        %478 = vmatpush1.msra.mxu0 0.0
        %479 = vmatprep.subr.mxu0 0.0
        %480 = vmatpush1.msra.mxu0 0.0
        %481 = vmatprep.subr.mxu0 0.0
        %482 = vmatpush1.msra.mxu0 0.0
        %483 = vmatprep.subr.mxu0 0.0
        %484 = vmatpush1.msra.mxu0 0.0
        %485 = vmatprep.mubr.f32.mxu0 0.0
        %486 = vmatmul.mubr.f32.gmra.mrb[0].mxu0 %v374
        %v487 = vpop.f32.mrb[0].mxu0
        %v488 = vadd.f32 0.0, %v487
        %v489 = vpop.f32.mrb[0].mxu0
        %v490 = vadd.f32 0.0, %v489
        %491 = vmatprep.mubr.f32.mxu0 0.0
        %492 = vmatmul.mubr.f32.gmra.mrb[0].mxu0 %v377
        %v493 = vpop.f32.mrb[0].mxu0
        %v494 = vadd.f32 0.0, %v493
        %v495 = vpop.f32.mrb[0].mxu0
        %v496 = vadd.f32 0.0, %v495
        %497 = vmatprep.mubr.f32.mxu0 0.0
        %498 = vmatmul.mubr.f32.gmra.mrb[0].mxu0 %v380
        %v499 = vpop.f32.mrb[0].mxu0
        %v500 = vadd.f32 0.0, %v499
        %v501 = vpop.f32.mrb[0].mxu0
        %v502 = vadd.f32 0.0, %v501
        %503 = vmatprep.mubr.f32.mxu0 0.0
        %504 = vmatmul.mubr.f32.gmra.mrb[0].mxu0 %v383
        %v505 = vpop.f32.mrb[0].mxu0
        %v506 = vadd.f32 0.0, %v505
        %v507 = vpop.f32.mrb[0].mxu0
        %v508 = vadd.f32 0.0, %v507
        %509 = vmatprep.mubr.f32.mxu0 0.0
        %510 = vmatmul.mubr.f32.gmra.mrb[0].mxu0 %v386
        %v511 = vpop.f32.mrb[0].mxu0
        %v512 = vadd.f32 0.0, %v511
        %v513 = vpop.f32.mrb[0].mxu0
        %v514 = vadd.f32 0.0, %v513
        %515 = vmatprep.mubr.f32.mxu0 0.0
        %516 = vmatmul.mubr.f32.gmra.mrb[0].mxu0 %v389
        %v517 = vpop.f32.mrb[0].mxu0
        %v518 = vadd.f32 0.0, %v517
        %v519 = vpop.f32.mrb[0].mxu0
        %v520 = vadd.f32 0.0, %v519
        %521 = vmatprep.mubr.f32.mxu0 0.0
        %522 = vmatmul.mubr.f32.gmra.mrb[0].mxu0 %v392
        %v523 = vpop.f32.mrb[0].mxu0
        %v524 = vadd.f32 0.0, %v523
        %v525 = vpop.f32.mrb[0].mxu0
        %v526 = vadd.f32 0.0, %v525
        %527 = vmatprep.mubr.f32.mxu0 0.0
        %528 = vmatmul.mubr.f32.gmra.mrb[0].mxu0 %v395
        %v529 = vpop.f32.mrb[0].mxu0
        %v530 = vadd.f32 0.0, %v529
        %v531 = vpop.f32.mrb[0].mxu0
        %v532 = vadd.f32 0.0, %v531
        %533 = vmatprep.mubr.f32.mxu0 0.0
        %534 = vmatmul.mubr.f32.gmra.mrb[0].mxu0 %v398
        %v535 = vpop.f32.mrb[0].mxu0
        %v536 = vadd.f32 0.0, %v535
        %v537 = vpop.f32.mrb[0].mxu0
        %v538 = vadd.f32 0.0, %v537
        %539 = vmatprep.mubr.f32.mxu0 0.0
        %540 = vmatmul.mubr.f32.gmra.mrb[0].mxu0 %v401
        %v541 = vpop.f32.mrb[0].mxu0
        %v542 = vadd.f32 0.0, %v541
        %v543 = vpop.f32.mrb[0].mxu0
        %v544 = vadd.f32 0.0, %v543
        %545 = vmatprep.mubr.f32.mxu0 0.0
        %546 = vmatmul.mubr.f32.gmra.mrb[0].mxu0 %v404
        %v547 = vpop.f32.mrb[0].mxu0
        %v548 = vadd.f32 0.0, %v547
        %v549 = vpop.f32.mrb[0].mxu0
        %v550 = vadd.f32 0.0, %v549
        %551 = vmatprep.mubr.f32.mxu0 0.0
        %552 = vmatmul.mubr.f32.gmra.mrb[0].mxu0 %v407
        %v553 = vpop.f32.mrb[0].mxu0
        %v554 = vadd.f32 0.0, %v553
        %v555 = vpop.f32.mrb[0].mxu0
        %v556 = vadd.f32 0.0, %v555
        %557 = vmatprep.mubr.f32.mxu0 0.0
        %558 = vmatmul.mubr.f32.gmra.mrb[0].mxu0 %v410
        %v559 = vpop.f32.mrb[0].mxu0
        %v560 = vadd.f32 0.0, %v559
        %v561 = vpop.f32.mrb[0].mxu0
        %v562 = vadd.f32 0.0, %v561
        %563 = vmatprep.mubr.f32.mxu0 0.0
        %564 = vmatmul.mubr.f32.gmra.mrb[0].mxu0 %v413
        %v565 = vpop.f32.mrb[0].mxu0
        %v566 = vadd.f32 0.0, %v565
        %v567 = vpop.f32.mrb[0].mxu0
        %v568 = vadd.f32 0.0, %v567
        %569 = vmatprep.mubr.f32.mxu0 0.0
        %570 = vmatmul.mubr.f32.gmra.mrb[0].mxu0 %v416
        %v571 = vpop.f32.mrb[0].mxu0
        %v572 = vadd.f32 0.0, %v571
        %v573 = vpop.f32.mrb[0].mxu0
        %v574 = vadd.f32 0.0, %v573
        %575 = vmatprep.mubr.f32.mxu0 0.0
        %576 = vmatmul.mubr.f32.gmra.mrb[0].mxu0 %v419
        %v577 = vpop.f32.mrb[0].mxu0
        %v578 = vadd.f32 0.0, %v577
        %v579 = vpop.f32.mrb[0].mxu0
        %v580 = vadd.f32 0.0, %v579
        %581 = vdwg.mxu0
        %582 = vmatprep.subr.mxu0 %v287
        %583 = vmatpush1.msra.mxu0 %v286
        %584 = vmatprep.subr.mxu0 %v291
        %585 = vmatpush1.msra.mxu0 %v290
        %586 = vmatprep.subr.mxu0 %v337
        %587 = vmatpush1.msra.mxu0 %v336
        %588 = vmatprep.subr.mxu0 0.0
        %589 = vmatpush1.msra.mxu0 0.0
        %590 = vmatprep.subr.mxu0 0.0
        %591 = vmatpush1.msra.mxu0 0.0
        %592 = vmatprep.subr.mxu0 0.0
        %593 = vmatpush1.msra.mxu0 0.0
        %594 = vmatprep.subr.mxu0 0.0
        %595 = vmatpush1.msra.mxu0 0.0
        %596 = vmatprep.subr.mxu0 0.0
        %597 = vmatpush1.msra.mxu0 0.0
        %598 = vmatprep.subr.mxu0 0.0
        %599 = vmatpush1.msra.mxu0 0.0
        %600 = vmatprep.subr.mxu0 0.0
        %601 = vmatpush1.msra.mxu0 0.0
        %602 = vmatprep.subr.mxu0 0.0
        %603 = vmatpush1.msra.mxu0 0.0
        %604 = vmatprep.subr.mxu0 0.0
        %605 = vmatpush1.msra.mxu0 0.0
        %606 = vmatprep.subr.mxu0 0.0
        %607 = vmatpush1.msra.mxu0 0.0
        %608 = vmatprep.subr.mxu0 0.0
        %609 = vmatpush1.msra.mxu0 0.0
        %610 = vmatprep.subr.mxu0 0.0
        %611 = vmatpush1.msra.mxu0 0.0
        %612 = vmatprep.subr.mxu0 0.0
        %613 = vmatpush1.msra.mxu0 0.0
        %614 = vmatprep.subr.mxu0 0.0
        %615 = vmatpush1.msra.mxu0 0.0
        %616 = vmatprep.subr.mxu0 0.0
        %617 = vmatpush1.msra.mxu0 0.0
        %618 = vmatprep.subr.mxu0 0.0
        %619 = vmatpush1.msra.mxu0 0.0
        %620 = vmatprep.subr.mxu0 0.0
        %621 = vmatpush1.msra.mxu0 0.0
        %622 = vmatprep.subr.mxu0 0.0
        %623 = vmatpush1.msra.mxu0 0.0
        %624 = vmatprep.subr.mxu0 0.0
        %625 = vmatpush1.msra.mxu0 0.0
        %626 = vmatprep.subr.mxu0 0.0
        %627 = vmatpush1.msra.mxu0 0.0
        %628 = vmatprep.subr.mxu0 0.0
        %629 = vmatpush1.msra.mxu0 0.0
        %630 = vmatprep.subr.mxu0 0.0
        %631 = vmatpush1.msra.mxu0 0.0
        %632 = vmatprep.subr.mxu0 0.0
        %633 = vmatpush1.msra.mxu0 0.0
        %634 = vmatprep.subr.mxu0 0.0
        %635 = vmatpush1.msra.mxu0 0.0
        %636 = vmatprep.subr.mxu0 0.0
        %637 = vmatpush1.msra.mxu0 0.0
        %638 = vmatprep.subr.mxu0 0.0
        %639 = vmatpush1.msra.mxu0 0.0
        %640 = vmatprep.subr.mxu0 0.0
        %641 = vmatpush1.msra.mxu0 0.0
        %642 = vmatprep.subr.mxu0 0.0
        %643 = vmatpush1.msra.mxu0 0.0
        %644 = vmatprep.subr.mxu0 0.0
        %645 = vmatpush1.msra.mxu0 0.0
        %646 = vmatprep.mubr.f32.mxu0 0.0
        %647 = vmatmul.mubr.f32.gmra.mrb[0].mxu0 %v374
        %v648 = vpop.f32.mrb[0].mxu0
        %v649 = vadd.f32 0.0, %v648
        %v650 = vpop.f32.mrb[0].mxu0
        %v651 = vadd.f32 0.0, %v650
        %652 = vmatprep.mubr.f32.mxu0 0.0
        %653 = vmatmul.mubr.f32.gmra.mrb[0].mxu0 %v377
        %v654 = vpop.f32.mrb[0].mxu0
        %v655 = vadd.f32 0.0, %v654
        %v656 = vpop.f32.mrb[0].mxu0
        %v657 = vadd.f32 0.0, %v656
        %658 = vmatprep.mubr.f32.mxu0 0.0
        %659 = vmatmul.mubr.f32.gmra.mrb[0].mxu0 %v380
        %v660 = vpop.f32.mrb[0].mxu0
        %v661 = vadd.f32 0.0, %v660
        %v662 = vpop.f32.mrb[0].mxu0
        %v663 = vadd.f32 0.0, %v662
        %664 = vmatprep.mubr.f32.mxu0 0.0
        %665 = vmatmul.mubr.f32.gmra.mrb[0].mxu0 %v383
        %v666 = vpop.f32.mrb[0].mxu0
        %v667 = vadd.f32 0.0, %v666
        %v668 = vpop.f32.mrb[0].mxu0
        %v669 = vadd.f32 0.0, %v668
        %670 = vmatprep.mubr.f32.mxu0 0.0
        %671 = vmatmul.mubr.f32.gmra.mrb[0].mxu0 %v386
        %v672 = vpop.f32.mrb[0].mxu0
        %v673 = vadd.f32 0.0, %v672
        %v674 = vpop.f32.mrb[0].mxu0
        %v675 = vadd.f32 0.0, %v674
        %676 = vmatprep.mubr.f32.mxu0 0.0
        %677 = vmatmul.mubr.f32.gmra.mrb[0].mxu0 %v389
        %v678 = vpop.f32.mrb[0].mxu0
        %v679 = vadd.f32 0.0, %v678
        %v680 = vpop.f32.mrb[0].mxu0
        %v681 = vadd.f32 0.0, %v680
        %682 = vmatprep.mubr.f32.mxu0 0.0
        %683 = vmatmul.mubr.f32.gmra.mrb[0].mxu0 %v392
        %v684 = vpop.f32.mrb[0].mxu0
        %v685 = vadd.f32 0.0, %v684
        %v686 = vpop.f32.mrb[0].mxu0
        %v687 = vadd.f32 0.0, %v686
        %688 = vmatprep.mubr.f32.mxu0 0.0
        %689 = vmatmul.mubr.f32.gmra.mrb[0].mxu0 %v395
        %v690 = vpop.f32.mrb[0].mxu0
        %v691 = vadd.f32 0.0, %v690
        %v692 = vpop.f32.mrb[0].mxu0
        %v693 = vadd.f32 0.0, %v692
        %694 = vmatprep.mubr.f32.mxu0 0.0
        %695 = vmatmul.mubr.f32.gmra.mrb[0].mxu0 %v398
        %v696 = vpop.f32.mrb[0].mxu0
        %v697 = vadd.f32 0.0, %v696
        %v698 = vpop.f32.mrb[0].mxu0
        %v699 = vadd.f32 0.0, %v698
        %700 = vmatprep.mubr.f32.mxu0 0.0
        %701 = vmatmul.mubr.f32.gmra.mrb[0].mxu0 %v401
        %v702 = vpop.f32.mrb[0].mxu0
        %v703 = vadd.f32 0.0, %v702
        %v704 = vpop.f32.mrb[0].mxu0
        %v705 = vadd.f32 0.0, %v704
        %706 = vmatprep.mubr.f32.mxu0 0.0
        %707 = vmatmul.mubr.f32.gmra.mrb[0].mxu0 %v404
        %v708 = vpop.f32.mrb[0].mxu0
        %v709 = vadd.f32 0.0, %v708
        %v710 = vpop.f32.mrb[0].mxu0
        %v711 = vadd.f32 0.0, %v710
        %712 = vmatprep.mubr.f32.mxu0 0.0
        %713 = vmatmul.mubr.f32.gmra.mrb[0].mxu0 %v407
        %v714 = vpop.f32.mrb[0].mxu0
        %v715 = vadd.f32 0.0, %v714
        %v716 = vpop.f32.mrb[0].mxu0
        %v717 = vadd.f32 0.0, %v716
        %718 = vmatprep.mubr.f32.mxu0 0.0
        %719 = vmatmul.mubr.f32.gmra.mrb[0].mxu0 %v410
        %v720 = vpop.f32.mrb[0].mxu0
        %v721 = vadd.f32 0.0, %v720
        %v722 = vpop.f32.mrb[0].mxu0
        %v723 = vadd.f32 0.0, %v722
        %724 = vmatprep.mubr.f32.mxu0 0.0
        %725 = vmatmul.mubr.f32.gmra.mrb[0].mxu0 %v413
        %v726 = vpop.f32.mrb[0].mxu0
        %v727 = vadd.f32 0.0, %v726
        %v728 = vpop.f32.mrb[0].mxu0
        %v729 = vadd.f32 0.0, %v728
        %730 = vmatprep.mubr.f32.mxu0 0.0
        %731 = vmatmul.mubr.f32.gmra.mrb[0].mxu0 %v416
        %v732 = vpop.f32.mrb[0].mxu0
        %v733 = vadd.f32 0.0, %v732
        %v734 = vpop.f32.mrb[0].mxu0
        %v735 = vadd.f32 0.0, %v734
        %736 = vmatprep.mubr.f32.mxu0 0.0
        %737 = vmatmul.mubr.f32.gmra.mrb[0].mxu0 %v419
        %v738 = vpop.f32.mrb[0].mxu0
        %v739 = vadd.f32 0.0, %v738
        %v740 = vpop.f32.mrb[0].mxu0
        %v741 = vadd.f32 0.0, %v740
        %742 = vdwg.mxu0
        %743 = vst [vmem:[%s280] sm:$0xff] %v488
        %744 = vst [vmem:[%s280 + $0x8] sm:$0xff] %v490
        %745 = vst [vmem:[%s280 + $0x10] sm:$0xff] %v649
        %746 = vst [vmem:[%s280 + $0x18] sm:$0xff] %v651
        %747 = vst [vmem:[%s280 + $0x20] sm:$0xff] %v494
        %748 = vst [vmem:[%s280 + $0x28] sm:$0xff] %v496
        %749 = vst [vmem:[%s280 + $0x30] sm:$0xff] %v655
        %750 = vst [vmem:[%s280 + $0x38] sm:$0xff] %v657
        %751 = vst [vmem:[%s280 + $0x40] sm:$0xff] %v500
        %752 = vst [vmem:[%s280 + $0x48] sm:$0xff] %v502
        %753 = vst [vmem:[%s280 + $0x50] sm:$0xff] %v661
        %754 = vst [vmem:[%s280 + $0x58] sm:$0xff] %v663
        %755 = vst [vmem:[%s280 + $0x60] sm:$0xff] %v506
        %756 = vst [vmem:[%s280 + $0x68] sm:$0xff] %v508
        %757 = vst [vmem:[%s280 + $0x70] sm:$0xff] %v667
        %758 = vst [vmem:[%s280 + $0x78] sm:$0xff] %v669
        %759 = vst [vmem:[%s280 + $0x80] sm:$0xff] %v512
        %760 = vst [vmem:[%s280 + $0x88] sm:$0xff] %v514
        %761 = vst [vmem:[%s280 + $0x90] sm:$0xff] %v673
        %762 = vst [vmem:[%s280 + $0x98] sm:$0xff] %v675
        %763 = vst [vmem:[%s280 + $0xa0] sm:$0xff] %v518
        %764 = vst [vmem:[%s280 + $0xa8] sm:$0xff] %v520
        %765 = vst [vmem:[%s280 + $0xb0] sm:$0xff] %v679
        %766 = vst [vmem:[%s280 + $0xb8] sm:$0xff] %v681
        %767 = vst [vmem:[%s280 + $0xc0] sm:$0xff] %v524
        %768 = vst [vmem:[%s280 + $0xc8] sm:$0xff] %v526
        %769 = vst [vmem:[%s280 + $0xd0] sm:$0xff] %v685
        %770 = vst [vmem:[%s280 + $0xd8] sm:$0xff] %v687
        %771 = vst [vmem:[%s280 + $0xe0] sm:$0xff] %v530
        %772 = vst [vmem:[%s280 + $0xe8] sm:$0xff] %v532
        %773 = vst [vmem:[%s280 + $0xf0] sm:$0xff] %v691
        %774 = vst [vmem:[%s280 + $0xf8] sm:$0xff] %v693
        %775 = vst [vmem:[%s280 + $0x100] sm:$0xff] %v536
        %776 = vst [vmem:[%s280 + $0x108] sm:$0xff] %v538
        %777 = vst [vmem:[%s280 + $0x110] sm:$0xff] %v697
        %778 = vst [vmem:[%s280 + $0x118] sm:$0xff] %v699
        %779 = vst [vmem:[%s280 + $0x120] sm:$0xff] %v542
        %780 = vst [vmem:[%s280 + $0x128] sm:$0xff] %v544
        %781 = vst [vmem:[%s280 + $0x130] sm:$0xff] %v703
        %782 = vst [vmem:[%s280 + $0x138] sm:$0xff] %v705
        %783 = vst [vmem:[%s280 + $0x140] sm:$0xff] %v548
        %784 = vst [vmem:[%s280 + $0x148] sm:$0xff] %v550
        %785 = vst [vmem:[%s280 + $0x150] sm:$0xff] %v709
        %786 = vst [vmem:[%s280 + $0x158] sm:$0xff] %v711
        %787 = vst [vmem:[%s280 + $0x160] sm:$0xff] %v554
        %788 = vst [vmem:[%s280 + $0x168] sm:$0xff] %v556
        %789 = vst [vmem:[%s280 + $0x170] sm:$0xff] %v715
        %790 = vst [vmem:[%s280 + $0x178] sm:$0xff] %v717
        %791 = vst [vmem:[%s280 + $0x180] sm:$0xff] %v560
        %792 = vst [vmem:[%s280 + $0x188] sm:$0xff] %v562
        %793 = vst [vmem:[%s280 + $0x190] sm:$0xff] %v721
        %794 = vst [vmem:[%s280 + $0x198] sm:$0xff] %v723
        %795 = vst [vmem:[%s280 + $0x1a0] sm:$0xff] %v566
        %796 = vst [vmem:[%s280 + $0x1a8] sm:$0xff] %v568
        %797 = vst [vmem:[%s280 + $0x1b0] sm:$0xff] %v727
        %798 = vst [vmem:[%s280 + $0x1b8] sm:$0xff] %v729
        %799 = vst [vmem:[%s280 + $0x1c0] sm:$0xff] %v572
        %800 = vst [vmem:[%s280 + $0x1c8] sm:$0xff] %v574
        %801 = vst [vmem:[%s280 + $0x1d0] sm:$0xff] %v733
        %802 = vst [vmem:[%s280 + $0x1d8] sm:$0xff] %v735
        %803 = vst [vmem:[%s280 + $0x1e0] sm:$0xff] %v578
        %804 = vst [vmem:[%s280 + $0x1e8] sm:$0xff] %v580
        %805 = vst [vmem:[%s280 + $0x1f0] sm:$0xff] %v739
        %806 = vst [vmem:[%s280 + $0x1f8] sm:$0xff] %v741
        %s807 = sand.u32 %s125, 1
        %s808 = scalar_lea.sflag [#allocation4], %s807
        %s809 = sand.u32 %s125, 1
        %s810 = smul.addr %s809, 512
        %s811 = scalar_lea.vmem [#allocation8], %s810
        // Predicated region
        $region45: #{tpu_custom_call.1} parent=31 // pred_check
          %p812 = pneg %p135
        $region46: #{tpu_custom_call.1} parent=31 // pred_check_branch
          %814 = sbr.rel (%p812) target = $region48
        $region47: #{tpu_custom_call.1} parent=31 // pred_region
          %s815 = smul.u32 16, %s28
          %s817 = ssub.s32 8192, 8192
          %818 = vsyncadd %s808, %s817
          %s819 = smul.addr %s815, 4
          %s820 = smul.addr %s27, 256
          %s821 = sadd.s32 %s819, %s820
          %s822 = smul.addr %s821, 128
          %s823 = scalar_lea.hbm %s3, %s822
          %s824 = sshll.u32 %s811, 4
          %s825 = int_to_ptr.vmem [resolvable:$true] %s824
          %830 = dma.vmem_to_hbm [thread:$0]  %s825, 8192, %s823, %s808, 512, 512, 32
        $region48: #{tpu_custom_call.1} parent=31 // pred_fallthru
          _
      $region32: #{tpu_custom_call.1} parent=5 // pred_fallthru
        _
      %p831 = scmp.le.s32.totalorder 2, %s18
      // Predicated region
      $region49: #{tpu_custom_call.1} parent=5 // pred_check
        %p832 = pneg %p831
      $region50: #{tpu_custom_call.1} parent=5 // pred_check_branch
        %834 = sbr.rel (%p832) target = $region52
      $region51: #{tpu_custom_call.1} parent=5 // pred_region
        %s835 = ssub.s32 %s18, 2
        // Predicated region
        $region53: #{tpu_custom_call.1} parent=51 // pred_check
          %p836 = pneg %p141
        $region54: #{tpu_custom_call.1} parent=51 // pred_check_branch
          %838 = sbr.rel (%p836) target = $region56
        $region55: #{tpu_custom_call.1} parent=51 // pred_region
          %s839 = sand.u32 %s126, 1
          %s840 = scalar_lea.sflag [#allocation4], %s839
          %s841 = sand.u32 %s126, 1
          %s842 = smul.addr %s841, 512
          %s843 = scalar_lea.vmem [#allocation8], %s842
          %844 = dma.done %s840, 8192
        $region56: #{tpu_custom_call.1} parent=51 // pred_fallthru
          _
      $region52: #{tpu_custom_call.1} parent=5 // pred_fallthru
        _
    $region6: #{tpu_custom_call.1} parent=1 // loop_footer
      %s22 = sadd.s32 1, %s18
    $region7: #{tpu_custom_call.1} parent=1 // loop_footer_branch
      %17 = sbr.rel target = $region3
    $region8: #{tpu_custom_call.1} parent=1 // loop_exit
      _
    %845 = vsyncpa [#allocation3], 1
    %s846 = scalar_lea.sflag [#allocation3], 1
    %847 = vsyncpa %s846, 1
    %848 = vsyncpa [#allocation6], 1
    %s849 = scalar_lea.sflag [#allocation6], 1
    %850 = vsyncpa %s849, 1
    %851 = vsyncpa [#allocation4], 1
    %s852 = scalar_lea.sflag [#allocation4], 1
    %853 = vsyncpa %s852, 1

</llo_original>
